<compile_context>
chip_gen: v6e
topology: v6e:2x2x1
jax: 0.10.0
libtpu: 0.0.40
codegen_flags: <defaults>
</compile_context>

<pallas_src>
import jax
import jax.numpy as jnp
from jax.experimental import pallas as pl
from jax.experimental.pallas import tpu as pltpu


def _output_layer_kernel(x_ref, w1_ref, b1_ref, w2_ref, b2_ref, o_ref):
    # x_ref : (K1, tm)    lane-dense tile of xT; K1 = T*C (full contraction dim)
    # w1_ref: (H,  K1)    FC1 weight, native nn.Linear (out, in) layout, resident
    # b1_ref: (H,  1)     FC1 bias (f32)
    # w2_ref: (Dout, H)   FC2 weight, native layout, resident
    # b2_ref: (Dout, 1)   FC2 bias (f32)
    # o_ref : (Dout, tm)  lane-dense output tile
    wdt = w1_ref.dtype
    x = x_ref[...].astype(wdt)

    # FC1: single big-K MXU matmul over the whole (T*C) contraction, f32 acc.
    h = jnp.dot(w1_ref[...], x, preferred_element_type=jnp.float32)
    h = jnp.maximum(h + b1_ref[...], 0.0)            # bias + ReLU in f32 (VPU)

    # FC2
    y = jnp.dot(w2_ref[...], h.astype(wdt), preferred_element_type=jnp.float32)
    y = y + b2_ref[...]
    o_ref[...] = y.astype(o_ref.dtype)


def _tpu_vmem_capacity_bytes():
    """Generation-aware VMEM capacity (128 MiB v5e/v6e, 64 MiB per-TC v7x)."""
    try:
        info = pltpu.get_tpu_info()
        cap = getattr(info, "vmem_capacity_bytes", None)
        if cap:
            return int(cap)
    except Exception:
        pass
    return 128 * 1024 * 1024  # conservative fallback


def _pick_tile_m(m, k1, hidden, dout, x_itemsize, w_itemsize, budget_bytes):
    """Largest lane-tile (multiple of 128) over the folded B*N axis whose
    double-buffered working set fits the generation-aware VMEM budget, while
    keeping the grid long enough to feed both v7x TensorCores / the pipeline."""
    if m <= 128:
        return m            # block == full dim is always legal

    def pad(v, mult):
        return ((v + mult - 1) // mult) * mult

    def working_set(tm):
        x_tile = pad(k1, 8) * tm * x_itemsize
        o_tile = pad(dout, 8) * tm * x_itemsize
        w_res = (pad(hidden, 8) * pad(k1, 128)
                 + pad(dout, 8) * pad(hidden, 128)) * w_itemsize
        b_res = (pad(hidden, 8) + pad(dout, 8)) * 128 * 4
        return 2 * (x_tile + o_tile + w_res + b_res)   # conservative 2x-buffer

    tm = 128
    for cand in (2048, 1024, 512, 256, 128):
        if cand <= m and working_set(cand) <= budget_bytes:
            tm = cand
            break
    # Keep >= ~8 grid steps when the problem is big enough (v7x has 2 TCs and
    # the pipeline needs steps to overlap). 512 already hits ~85% of the HBM
    # roofline, so never shrink below 512 purely for grid-length reasons.
    while tm > 512 and pl.cdiv(m, tm) < 8:
        tm //= 2
    return tm


def prepare_output_layer_params(w1, b1, w2, b2, *, hidden_dim, horizon,
                                num_features, use_bf16=False):
    """One-time (init path) parameter prep.  The transposed kernel consumes the
    nn.Linear weights in their NATIVE (out, in) layout, so this is only a dtype
    cast plus reshaping the biases to column vectors."""
    dout = horizon * num_features
    wdt = jnp.bfloat16 if use_bf16 else jnp.float32
    w1r = jnp.asarray(w1, jnp.float32).astype(wdt)              # (H, T*C)
    w2r = jnp.asarray(w2, jnp.float32).astype(wdt)              # (Dout, H)
    b1r = jnp.asarray(b1, jnp.float32).reshape(hidden_dim, 1)   # (H, 1)
    b2r = jnp.asarray(b2, jnp.float32).reshape(dout, 1)         # (Dout, 1)
    return (w1r, b1r, w2r, b2r)


def output_layer_pallas(x, prepared_params, *, num_of_vertices, history,
                        in_dim, num_features, hidden_dim, horizon,
                        tile_m=None):
    """x: (B, Tin, N, Cin) -> (B, horizon, N, num_features)."""
    w1r, b1r, w2r, b2r = prepared_params
    B, T, N, C = x.shape
    assert T == history and N == num_of_vertices and C == in_dim
    k1 = T * C
    dout = horizon * num_features
    m = B * N

    # One cheap XLA permute per call: (B,T,N,C) -> (T*C, B*N).  This makes the
    # streamed input block lane-dense and lets FC1 be a single big-K matmul.
    # If the upstream STSGCN block can emit activations already in this layout
    # (and/or in bf16), feed them directly and skip this transpose.
    x_t = jnp.transpose(x, (1, 3, 0, 2)).reshape(k1, m)

    vmem_cap = _tpu_vmem_capacity_bytes()
    if tile_m is None:
        tile_m = _pick_tile_m(
            m, k1, hidden_dim, dout,
            jnp.dtype(x.dtype).itemsize, jnp.dtype(w1r.dtype).itemsize,
            budget_bytes=min(vmem_cap // 3, 48 * 1024 * 1024))
    tm = tile_m
    grid = (pl.cdiv(m, tm),)

    out = pl.pallas_call(
        _output_layer_kernel,
        out_shape=jax.ShapeDtypeStruct((dout, m), x.dtype),
        grid_spec=pltpu.PrefetchScalarGridSpec(
            num_scalar_prefetch=0,
            grid=grid,
            in_specs=[
                # Streamed, lane-dense input tile: all (T*C) rows x tm columns.
                pl.BlockSpec((k1, tm), lambda i: (0, i)),
                # Weights / biases: constant index_maps -> VMEM-resident.
                pl.BlockSpec((hidden_dim, k1), lambda i: (0, 0)),
                pl.BlockSpec((hidden_dim, 1), lambda i: (0, 0)),
                pl.BlockSpec((dout, hidden_dim), lambda i: (0, 0)),
                pl.BlockSpec((dout, 1), lambda i: (0, 0)),
            ],
            # Lane-dense output tile: unmasked vst, contiguous writeback.
            out_specs=pl.BlockSpec((dout, tm), lambda i: (0, i)),
        ),
        compiler_params=pltpu.CompilerParams(
            dimension_semantics=("parallel",),
            vmem_limit_bytes=min(vmem_cap // 2, 64 * 1024 * 1024)),
    )(x_t, w1r, b1r, w2r, b2r)

    # Cheap glue on the (small) output only: (Dout, B*N) -> (B, horizon, N, F).
    out = out.reshape(horizon, num_features, B, N)
    return jnp.transpose(out, (2, 0, 3, 1))


def _reference(x, params, *, hidden_dim, horizon, num_features):
    w1, b1, w2, b2 = params
    B, T, N, C = x.shape
    xf = jnp.transpose(x, (0, 2, 1, 3)).reshape(B, N, T * C)
    h = jax.nn.relu(xf @ w1.T + b1)
    y = (h @ w2.T + b2).reshape(B, N, horizon, num_features)
    return jnp.transpose(y, (0, 2, 1, 3))


def _run_case(key, *, B, history, num_of_vertices, in_dim, num_features,
              hidden_dim, horizon, tile_m=None):
    kx, k1, k2, k3, k4 = jax.random.split(key, 5)
    din = history * in_dim
    dout = horizon * num_features
    x = jax.random.normal(kx, (B, history, num_of_vertices, in_dim),
                          dtype=jnp.float32)
    # nn.Linear shapes: weight=(out, in), bias=(out,)
    w1 = jax.random.normal(k1, (hidden_dim, din), dtype=jnp.float32) * 0.1
    b1 = jax.random.normal(k2, (hidden_dim,), dtype=jnp.float32) * 0.1
    w2 = jax.random.normal(k3, (dout, hidden_dim), dtype=jnp.float32) * 0.1
    b2 = jax.random.normal(k4, (dout,), dtype=jnp.float32) * 0.1
    params = (w1, b1, w2, b2)

    ref = _reference(x, params, hidden_dim=hidden_dim, horizon=horizon,
                     num_features=num_features)

    # f32-weight path (strict tolerance)
    prep32 = prepare_output_layer_params(
        w1, b1, w2, b2, hidden_dim=hidden_dim, horizon=horizon,
        num_features=num_features, use_bf16=False)
    out32 = output_layer_pallas(
        x, prep32, num_of_vertices=num_of_vertices, history=history,
        in_dim=in_dim, num_features=num_features, hidden_dim=hidden_dim,
        horizon=horizon, tile_m=tile_m)
    out32 = jax.block_until_ready(out32)
    assert out32.shape == (B, horizon, num_of_vertices, num_features), out32.shape
    assert jnp.allclose(out32, ref, atol=2e-5, rtol=2e-5), "f32 mismatch vs reference"

    # bf16-weight path (MXU-native dtype; mandatory-for-speed on v5e)
    prep16 = prepare_output_layer_params(
        w1, b1, w2, b2, hidden_dim=hidden_dim, horizon=horizon,
        num_features=num_features, use_bf16=True)
    out16 = output_layer_pallas(
        x, prep16, num_of_vertices=num_of_vertices, history=history,
        in_dim=in_dim, num_features=num_features, hidden_dim=hidden_dim,
        horizon=horizon, tile_m=tile_m)
    out16 = jax.block_until_ready(out16)
    assert jnp.allclose(out16, ref, atol=5e-2, rtol=5e-2), "bf16 mismatch vs reference"


if __name__ == "__main__":
    key = jax.random.PRNGKey(0)
    k_small, k_edge = jax.random.split(key, 2)

    # Case 1: small shapes consistent with the module's forward (single tile).
    _run_case(k_small, B=2, history=8, num_of_vertices=16, in_dim=4,
              num_features=4, hidden_dim=32, horizon=1)

    # Case 2: B*N not a multiple of the lane tile -> exercises padded edge
    # blocks (padded garbage columns flow through the matmuls but are masked
    # on writeback), plus a multi-step grid for the pipeline.
    _run_case(k_edge, B=2, history=8, num_of_vertices=200, in_dim=4,
              num_features=4, hidden_dim=32, horizon=1, tile_m=128)

    print("KERNEL_OK")
</pallas_src>

<mosaic_0001>
module attributes {stable_mosaic.version = 11 : i64} {
  func.func @_output_layer_kernel(%arg0: i32, %arg1: memref<32x32xf32, #tpu.memory_space<vmem>>, %arg2: memref<32x32xf32, #tpu.memory_space<vmem>>, %arg3: memref<32x1xf32, #tpu.memory_space<vmem>>, %arg4: memref<4x32xf32, #tpu.memory_space<vmem>>, %arg5: memref<4x1xf32, #tpu.memory_space<vmem>>, %arg6: memref<4x32xf32, #tpu.memory_space<vmem>>) attributes {dimension_semantics = [#tpu.dimension_semantics<parallel>], iteration_bounds = array<i64: 1>, scalar_prefetch = 0 : i64, scratch_operands = 0 : i64, tpu.core_type = #tpu.core_type<tc>, window_params = [{transform_indices = @transform_0, window_bounds = array<i64: 32, 32>}, {pipeline_mode = #tpu.pipeline_mode<synchronous>, transform_indices = @transform_1, window_bounds = array<i64: 32, 32>}, {pipeline_mode = #tpu.pipeline_mode<synchronous>, transform_indices = @transform_2, window_bounds = array<i64: 32, 1>}, {pipeline_mode = #tpu.pipeline_mode<synchronous>, transform_indices = @transform_3, window_bounds = array<i64: 4, 32>}, {pipeline_mode = #tpu.pipeline_mode<synchronous>, transform_indices = @transform_4, window_bounds = array<i64: 4, 1>}, {transform_indices = @transform_5, window_bounds = array<i64: 4, 32>}]} {
    %c0 = arith.constant 0 : index
    %c0_0 = arith.constant 0 : index
    %0 = vector.load %arg1[%c0, %c0_0] : memref<32x32xf32, #tpu.memory_space<vmem>>, vector<32x32xf32>
    %c0_1 = arith.constant 0 : index
    %c0_2 = arith.constant 0 : index
    %1 = vector.load %arg2[%c0_1, %c0_2] : memref<32x32xf32, #tpu.memory_space<vmem>>, vector<32x32xf32>
    %cst = arith.constant dense<0.000000e+00> : vector<32x32xf32>
    %2 = tpu.matmul %1, %0, %cst {dimension_numbers = #tpu.dot_dimension_numbers<[1], [0], [0], [1], [0, 0, 1, 1], [], []>} : vector<32x32xf32>, vector<32x32xf32>, vector<32x32xf32> -> vector<32x32xf32>
    %c0_3 = arith.constant 0 : index
    %c0_4 = arith.constant 0 : index
    %3 = vector.load %arg3[%c0_3, %c0_4] : memref<32x1xf32, #tpu.memory_space<vmem>>, vector<32x1xf32>
    %4 = vector.broadcast %3 : vector<32x1xf32> to vector<32x32xf32>
    %5 = arith.addf %2, %4 : vector<32x32xf32>
    %cst_5 = arith.constant 0.000000e+00 : f32
    %6 = vector.broadcast %cst_5 : f32 to vector<32x32xf32>
    %7 = arith.maximumf %5, %6 : vector<32x32xf32>
    %c0_6 = arith.constant 0 : index
    %c0_7 = arith.constant 0 : index
    %8 = vector.load %arg4[%c0_6, %c0_7] : memref<4x32xf32, #tpu.memory_space<vmem>>, vector<4x32xf32>
    %cst_8 = arith.constant dense<0.000000e+00> : vector<4x32xf32>
    %9 = tpu.matmul %8, %7, %cst_8 {dimension_numbers = #tpu.dot_dimension_numbers<[1], [0], [0], [1], [0, 0, 1, 1], [], []>} : vector<4x32xf32>, vector<32x32xf32>, vector<4x32xf32> -> vector<4x32xf32>
    %c0_9 = arith.constant 0 : index
    %c0_10 = arith.constant 0 : index
    %10 = vector.load %arg5[%c0_9, %c0_10] : memref<4x1xf32, #tpu.memory_space<vmem>>, vector<4x1xf32>
    %11 = vector.broadcast %10 : vector<4x1xf32> to vector<4x32xf32>
    %12 = arith.addf %9, %11 : vector<4x32xf32>
    %c0_11 = arith.constant 0 : index
    %c0_12 = arith.constant 0 : index
    %13 = vector.load %arg6[%c0_11, %c0_12] : memref<4x32xf32, #tpu.memory_space<vmem>>, vector<4x32xf32>
    tpu.vector_store %arg6[%c0_11, %c0_12], %12 {strides = array<i32>} : memref<4x32xf32, #tpu.memory_space<vmem>>, vector<4x32xf32>,
    return
  }
  func.func @transform_0(%arg0: i32) -> (i32, i32) {
    %c0_i32 = arith.constant 0 : i32
    %c0_i32_0 = arith.constant 0 : i32
    return %c0_i32, %arg0 : i32, i32
  }
  func.func @transform_1(%arg0: i32) -> (i32, i32) {
    %c0_i32 = arith.constant 0 : i32
    %c0_i32_0 = arith.constant 0 : i32
    %c0_i32_1 = arith.constant 0 : i32
    return %c0_i32, %c0_i32_0 : i32, i32
  }
  func.func @transform_2(%arg0: i32) -> (i32, i32) {
    %c0_i32 = arith.constant 0 : i32
    %c0_i32_0 = arith.constant 0 : i32
    %c0_i32_1 = arith.constant 0 : i32
    return %c0_i32, %c0_i32_0 : i32, i32
  }
  func.func @transform_3(%arg0: i32) -> (i32, i32) {
    %c0_i32 = arith.constant 0 : i32
    %c0_i32_0 = arith.constant 0 : i32
    %c0_i32_1 = arith.constant 0 : i32
    return %c0_i32, %c0_i32_0 : i32, i32
  }
  func.func @transform_4(%arg0: i32) -> (i32, i32) {
    %c0_i32 = arith.constant 0 : i32
    %c0_i32_0 = arith.constant 0 : i32
    %c0_i32_1 = arith.constant 0 : i32
    return %c0_i32, %c0_i32_0 : i32, i32
  }
  func.func @transform_5(%arg0: i32) -> (i32, i32) {
    %c0_i32 = arith.constant 0 : i32
    %c0_i32_0 = arith.constant 0 : i32
    return %c0_i32, %arg0 : i32, i32
  }
}

</mosaic_0001>

<llo_original>
// kernel: tpu_custom_call.1
$region0: #{tpu_custom_call.1}
  #allocation0 [shape = 'u32[]', space=smem, size = 0x4, offset = 0x4, fixed_abs, tag = 'smem constant byte address 0x4 - core index']
  #allocation1 [shape = 'u32[144,128]{1,0:T(1,128)}', space=vmem, size = 0x12000, scoped, tag = 'internal scratch']
  %s0 = inlined_call_operand.vmem [shape: f32[32,32], index: 0, kind: input, shape index: {}]
  %s1 = inlined_call_operand.hbm [shape: f32[32,32], index: 1, kind: input, shape index: {}]
  %s2 = inlined_call_operand.vmem [shape: f32[32,1], index: 2, kind: input, shape index: {}]
  %s3 = inlined_call_operand.vmem [shape: f32[4,32], index: 3, kind: input, shape index: {}]
  %s4 = inlined_call_operand.vmem [shape: f32[4,1], index: 4, kind: input, shape index: {}]
  %s5 = inlined_call_operand.hbm [shape: f32[4,32], index: 5, kind: output, shape index: {}]
  %s6 = sld [smem:[#allocation0]]
  $region34: #{tpu_custom_call.1} parent=0
    _
  %s8 = ssub.s32 1, %s6
  %s9 = scalar_select 0, %s8, %s6
  $region1: #{tpu_custom_call.1} parent=0
    #allocation2 [shape = 'u8[16384]{0}', space=vmem, size = 0x4000, scoped, tag = 'input window, operand 1, single buffered']
    #allocation3 [shape = 's32[1]{0}', space=sflag, size = 0x4, scoped, tag = 'scoped memory for tpu_custom_call.1']
    #allocation4 [shape = 's32[1]{0}', space=sflag, size = 0x4, scoped, tag = 'scoped memory for tpu_custom_call.1']
    #allocation5 [shape = 'u8[2048]{0}', space=vmem, size = 0x800, scoped, tag = 'output window, operand 0, single buffered']
    %10 = vsyncpa [#allocation3], 0
    %11 = vsyncpa [#allocation4], 0
    // Predicated region
    $region2: #{tpu_custom_call.1} parent=1 // pred_check
      _
    $region3: #{tpu_custom_call.1} parent=1 // pred_check_branch
      %13 = sbr.rel (0) target = $region5
    $region4: #{tpu_custom_call.1} parent=1 // pred_region
      _
    $region5: #{tpu_custom_call.1} parent=1 // pred_fallthru
      _
    // Predicated region
    $region6: #{tpu_custom_call.1} parent=1 // pred_check
      _
    $region7: #{tpu_custom_call.1} parent=1 // pred_check_branch
      %15 = sbr.rel (0) target = $region9
    $region8: #{tpu_custom_call.1} parent=1 // pred_region
      %s17 = ssub.s32 512, 512
      %18 = vsyncadd [#allocation3], %s17
      %s19 = sshll.u32 [#allocation2], 4
      %s20 = int_to_ptr.vmem [resolvable:$true] %s19
      %25 = dma.hbm_to_vmem [thread:$0]  %s1, 512, %s20, [#allocation3], 128, 128, 8
    $region9: #{tpu_custom_call.1} parent=1 // pred_fallthru
      _
    // Predicated region
    $region10: #{tpu_custom_call.1} parent=1 // pred_check
      _
    $region11: #{tpu_custom_call.1} parent=1 // pred_check_branch
      %27 = sbr.rel (0) target = $region13
    $region12: #{tpu_custom_call.1} parent=1 // pred_region
      _
    $region13: #{tpu_custom_call.1} parent=1 // pred_fallthru
      _
    // Predicated region
    $region14: #{tpu_custom_call.1} parent=1 // pred_check
      _
    $region15: #{tpu_custom_call.1} parent=1 // pred_check_branch
      %29 = sbr.rel (0) target = $region17
    $region16: #{tpu_custom_call.1} parent=1 // pred_region
      _
    $region17: #{tpu_custom_call.1} parent=1 // pred_fallthru
      _
    // Predicated region
    $region18: #{tpu_custom_call.1} parent=1 // pred_check
      _
    $region19: #{tpu_custom_call.1} parent=1 // pred_check_branch
      %31 = sbr.rel (0) target = $region21
    $region20: #{tpu_custom_call.1} parent=1 // pred_region
      _
    $region21: #{tpu_custom_call.1} parent=1 // pred_fallthru
      _
    // Predicated region
    $region22: #{tpu_custom_call.1} parent=1 // pred_check
      _
    $region23: #{tpu_custom_call.1} parent=1 // pred_check_branch
      %33 = sbr.rel (0) target = $region25
    $region24: #{tpu_custom_call.1} parent=1 // pred_region
      %34 = dma.done [#allocation3], 512
    $region25: #{tpu_custom_call.1} parent=1 // pred_fallthru
      _
    %v35 = vld [vmem:[%s0] sm:$0xff]
    %v36 = vld [vmem:[%s0 + $0x8] sm:$0xff]
    %v37 = vld [vmem:[%s0 + $0x10] sm:$0xff]
    %v38 = vld [vmem:[%s0 + $0x18] sm:$0xff]
    %v39 = vld [vmem:[#allocation2] sm:$0xff]
    %v40 = vld [vmem:[#allocation2 + $0x8] sm:$0xff]
    %v41 = vld [vmem:[#allocation2 + $0x10] sm:$0xff]
    %v42 = vld [vmem:[#allocation2 + $0x18] sm:$0xff]
    %v43 = vld [vmem:[%s2] sm:$0xff]
    %v44 = vld [vmem:[%s2 + $0x8] sm:$0xff]
    %v45 = vld [vmem:[%s2 + $0x10] sm:$0xff]
    %v46 = vld [vmem:[%s2 + $0x18] sm:$0xff]
    %48 = vset.pattern.permute.xlu0 0
    %49 = vperm.xlu0 %48, %v43
    %v50 = vpop.permute.xlu0 %49
    %53 = vset.pattern.permute.xlu0 0
    %54 = vperm.xlu0 %53, %v44
    %v55 = vpop.permute.xlu0 %54
    %58 = vset.pattern.permute.xlu0 0
    %59 = vperm.xlu0 %58, %v45
    %v60 = vpop.permute.xlu0 %59
    %63 = vset.pattern.permute.xlu0 0
    %64 = vperm.xlu0 %63, %v46
    %v65 = vpop.permute.xlu0 %64
    %vm67 = vcmask 261120
    %v69 = vsel %vm67, %v39, 0
    %v72 = vsel %vm67, %v40, 0
    %v75 = vsel %vm67, %v41, 0
    %v78 = vsel %vm67, %v42, 0
    %80 = vmatprep.subr.mxu0 0.0
    %81 = vmatpush1.msra.mxu0 0.0
    %82 = vmatprep.subr.mxu0 0.0
    %83 = vmatpush1.msra.mxu0 0.0
    %84 = vmatprep.subr.mxu0 0.0
    %85 = vmatpush1.msra.mxu0 0.0
    %86 = vmatprep.subr.mxu0 0.0
    %87 = vmatpush1.msra.mxu0 0.0
    %88 = vmatprep.subr.mxu0 0.0
    %89 = vmatpush1.msra.mxu0 0.0
    %90 = vmatprep.subr.mxu0 0.0
    %91 = vmatpush1.msra.mxu0 0.0
    %92 = vmatprep.subr.mxu0 0.0
    %93 = vmatpush1.msra.mxu0 0.0
    %94 = vmatprep.subr.mxu0 0.0
    %95 = vmatpush1.msra.mxu0 0.0
    %96 = vmatprep.subr.mxu0 0.0
    %97 = vmatpush1.msra.mxu0 0.0
    %98 = vmatprep.subr.mxu0 0.0
    %99 = vmatpush1.msra.mxu0 0.0
    %100 = vmatprep.subr.mxu0 0.0
    %101 = vmatpush1.msra.mxu0 0.0
    %102 = vmatprep.subr.mxu0 0.0
    %103 = vmatpush1.msra.mxu0 0.0
    %104 = vmatprep.subr.mxu0 0.0
    %105 = vmatpush1.msra.mxu0 %v38
    %106 = vmatprep.subr.mxu0 0.0
    %107 = vmatpush1.msra.mxu0 %v37
    %108 = vmatprep.subr.mxu0 0.0
    %109 = vmatpush1.msra.mxu0 %v36
    %110 = vmatprep.subr.mxu0 0.0
    %111 = vmatpush1.msra.mxu0 %v35
    %112 = vmatprep.subr.mxu0 0.0
    %113 = vmatpush2.msra.mxu0 0.0
    %114 = vmatprep.subr.mxu0 0.0
    %115 = vmatpush2.msra.mxu0 0.0
    %116 = vmatprep.subr.mxu0 0.0
    %117 = vmatpush2.msra.mxu0 0.0
    %118 = vmatprep.subr.mxu0 0.0
    %119 = vmatpush2.msra.mxu0 0.0
    %120 = vmatprep.subr.mxu0 0.0
    %121 = vmatpush2.msra.mxu0 0.0
    %122 = vmatprep.subr.mxu0 0.0
    %123 = vmatpush2.msra.mxu0 0.0
    %124 = vmatprep.subr.mxu0 0.0
    %125 = vmatpush2.msra.mxu0 0.0
    %126 = vmatprep.subr.mxu0 0.0
    %127 = vmatpush2.msra.mxu0 0.0
    %128 = vmatprep.subr.mxu0 0.0
    %129 = vmatpush2.msra.mxu0 0.0
    %130 = vmatprep.subr.mxu0 0.0
    %131 = vmatpush2.msra.mxu0 0.0
    %132 = vmatprep.subr.mxu0 0.0
    %133 = vmatpush2.msra.mxu0 0.0
    %134 = vmatprep.subr.mxu0 0.0
    %135 = vmatpush2.msra.mxu0 0.0
    %136 = vmatprep.subr.mxu0 0.0
    %137 = vmatpush2.msra.mxu0 0.0
    %138 = vmatprep.subr.mxu0 0.0
    %139 = vmatpush2.msra.mxu0 0.0
    %140 = vmatprep.subr.mxu0 0.0
    %141 = vmatpush2.msra.mxu0 0.0
    %142 = vmatprep.subr.mxu0 0.0
    %143 = vmatpush2.msra.mxu0 0.0
    %144 = vmatprep.mubr.f32.mxu0 0.0
    %145 = vmatmul.mubr.f32.gmra.mxu0 %v69
    %v146 = vpop.f32.mrf.mxu0
    %v147 = vadd.f32 %v50, %v146
    %v148 = vpop.f32.mrf.mxu0
    %149 = vmatprep.mubr.f32.mxu0 0.0
    %150 = vmatmul.mubr.f32.gmra.mxu0 %v72
    %v151 = vpop.f32.mrf.mxu0
    %v152 = vadd.f32 %v55, %v151
    %v153 = vpop.f32.mrf.mxu0
    %154 = vmatprep.mubr.f32.mxu0 0.0
    %155 = vmatmul.mubr.f32.gmra.mxu0 %v75
    %v156 = vpop.f32.mrf.mxu0
    %v157 = vadd.f32 %v60, %v156
    %v158 = vpop.f32.mrf.mxu0
    %159 = vmatprep.mubr.f32.mxu0 0.0
    %160 = vmatmul.mubr.f32.gmra.mxu0 %v78
    %v161 = vpop.f32.mrf.mxu0
    %v162 = vadd.f32 %v65, %v161
    %v163 = vpop.f32.mrf.mxu0
    %164 = vdwg.mxu0
    %v165 = vmax.f32 %v147, 0.0
    %v166 = vmax.f32 %v152, 0.0
    %v167 = vmax.f32 %v157, 0.0
    %v168 = vmax.f32 %v162, 0.0
    %v169 = vld [vmem:[%s3] sm:$0xf]
    %v170 = vld [vmem:[%s4] sm:$0xf]
    %172 = vset.pattern.permute.xlu0 0
    %173 = vperm.xlu0 %172, %v170
    %v174 = vpop.permute.xlu0 %173
    %v177 = vsel %vm67, %v169, 0
    %179 = vmatprep.subr.mxu0 0.0
    %180 = vmatpush1.msra.mxu0 0.0
    %181 = vmatprep.subr.mxu0 0.0
    %182 = vmatpush1.msra.mxu0 0.0
    %183 = vmatprep.subr.mxu0 0.0
    %184 = vmatpush1.msra.mxu0 0.0
    %185 = vmatprep.subr.mxu0 0.0
    %186 = vmatpush1.msra.mxu0 0.0
    %187 = vmatprep.subr.mxu0 0.0
    %188 = vmatpush1.msra.mxu0 0.0
    %189 = vmatprep.subr.mxu0 0.0
    %190 = vmatpush1.msra.mxu0 0.0
    %191 = vmatprep.subr.mxu0 0.0
    %192 = vmatpush1.msra.mxu0 0.0
    %193 = vmatprep.subr.mxu0 0.0
    %194 = vmatpush1.msra.mxu0 0.0
    %195 = vmatprep.subr.mxu0 0.0
    %196 = vmatpush1.msra.mxu0 0.0
    %197 = vmatprep.subr.mxu0 0.0
    %198 = vmatpush1.msra.mxu0 0.0
    %199 = vmatprep.subr.mxu0 0.0
    %200 = vmatpush1.msra.mxu0 0.0
    %201 = vmatprep.subr.mxu0 0.0
    %202 = vmatpush1.msra.mxu0 0.0
    %203 = vmatprep.subr.mxu0 0.0
    %204 = vmatpush1.msra.mxu0 %v168
    %205 = vmatprep.subr.mxu0 0.0
    %206 = vmatpush1.msra.mxu0 %v167
    %207 = vmatprep.subr.mxu0 0.0
    %208 = vmatpush1.msra.mxu0 %v166
    %209 = vmatprep.subr.mxu0 0.0
    %210 = vmatpush1.msra.mxu0 %v165
    %211 = vmatprep.subr.mxu0 0.0
    %212 = vmatpush2.msra.mxu0 0.0
    %213 = vmatprep.subr.mxu0 0.0
    %214 = vmatpush2.msra.mxu0 0.0
    %215 = vmatprep.subr.mxu0 0.0
    %216 = vmatpush2.msra.mxu0 0.0
    %217 = vmatprep.subr.mxu0 0.0
    %218 = vmatpush2.msra.mxu0 0.0
    %219 = vmatprep.subr.mxu0 0.0
    %220 = vmatpush2.msra.mxu0 0.0
    %221 = vmatprep.subr.mxu0 0.0
    %222 = vmatpush2.msra.mxu0 0.0
    %223 = vmatprep.subr.mxu0 0.0
    %224 = vmatpush2.msra.mxu0 0.0
    %225 = vmatprep.subr.mxu0 0.0
    %226 = vmatpush2.msra.mxu0 0.0
    %227 = vmatprep.subr.mxu0 0.0
    %228 = vmatpush2.msra.mxu0 0.0
    %229 = vmatprep.subr.mxu0 0.0
    %230 = vmatpush2.msra.mxu0 0.0
    %231 = vmatprep.subr.mxu0 0.0
    %232 = vmatpush2.msra.mxu0 0.0
    %233 = vmatprep.subr.mxu0 0.0
    %234 = vmatpush2.msra.mxu0 0.0
    %235 = vmatprep.subr.mxu0 0.0
    %236 = vmatpush2.msra.mxu0 0.0
    %237 = vmatprep.subr.mxu0 0.0
    %238 = vmatpush2.msra.mxu0 0.0
    %239 = vmatprep.subr.mxu0 0.0
    %240 = vmatpush2.msra.mxu0 0.0
    %241 = vmatprep.subr.mxu0 0.0
    %242 = vmatpush2.msra.mxu0 0.0
    %243 = vmatprep.mubr.f32.mxu0 0.0
    %244 = vmatmul.mubr.f32.gmra.mxu0 %v177
    %v245 = vpop.f32.mrf.mxu0
    %v246 = vadd.f32 %v174, %v245
    %v247 = vpop.f32.mrf.mxu0
    %248 = vdwg.mxu0
    %vm249 = vcmask 257024
    %250 = vst.msk [vmem:[#allocation5] sm:$0xf] %vm249, %v246
    // Predicated region
    $region26: #{tpu_custom_call.1} parent=1 // pred_check
      _
    $region27: #{tpu_custom_call.1} parent=1 // pred_check_branch
      %252 = sbr.rel (0) target = $region29
    $region28: #{tpu_custom_call.1} parent=1 // pred_region
      %s254 = ssub.s32 64, 64
      %255 = vsyncadd [#allocation4], %s254
      %s257 = sshll.u32 [#allocation5], 4
      %s258 = int_to_ptr.vmem [resolvable:$true] %s257
      %260 = dma.vmem_to_hbm [thread:$0]  %s258, 64, %s5, [#allocation4]
    $region29: #{tpu_custom_call.1} parent=1 // pred_fallthru
      _
    // Predicated region
    $region30: #{tpu_custom_call.1} parent=1 // pred_check
      _
    $region31: #{tpu_custom_call.1} parent=1 // pred_check_branch
      %262 = sbr.rel (0) target = $region33
    $region32: #{tpu_custom_call.1} parent=1 // pred_region
      %263 = dma.done [#allocation4], 64
    $region33: #{tpu_custom_call.1} parent=1 // pred_fallthru
      _
    %264 = vsyncpa [#allocation3], 1
    %265 = vsyncpa [#allocation4], 1

</llo_original>
